<compile_context>
chip_gen: v7x
topology: tpu7x:2x2x1
jax: 0.10.0
libtpu: 0.0.40
codegen_flags: <defaults>
</compile_context>

<pallas_src>
import jax
import jax.numpy as jnp
from jax.experimental import pallas as pl
from jax.experimental.pallas import tpu as pltpu

LANE = 128


def autoencoder_kernel(x_ref, w1_ref, b1_ref, w2_ref, b2_ref, o_ref):
    # encoder: relu(x @ W1^T + b1); bf16 x bf16 MXU matmul, f32 accumulation.
    h = jnp.dot(x_ref[...], w1_ref[...], preferred_element_type=jnp.float32)
    h = jnp.maximum(h + b1_ref[...], 0.0)          # bias/ReLU in f32
    # decoder: h @ W2^T + b2.  Explicit bf16 recast keeps the second matmul on
    # the fast bf16 MXU path (intentional mixed-precision choice).
    y = jnp.dot(h.astype(w2_ref.dtype), w2_ref[...],
                preferred_element_type=jnp.float32)
    o_ref[...] = (y + b2_ref[...]).astype(o_ref.dtype)


def autoencoder_forward(x, w1, b1, w2, b2, *, tile_m=None,
                        compute_dtype=jnp.bfloat16):
    """x: (B, F).  w1: (H, F) torch layout, b1: (H,), w2: (F, H), b2: (F,)."""
    B, F = x.shape
    H = w1.shape[0]
    if tile_m is None:
        tile_m = B                                  # single grid step by default
    assert B % tile_m == 0, "batch must be divisible by tile_m"

    # Pad the *output* dims of both matmuls (H and F) up to 128 lanes so the
    # hidden activation and the stored output are lane-dense (no masked vst).
    Hp = pl.cdiv(H, LANE) * LANE
    Fp = pl.cdiv(F, LANE) * LANE

    # torch Linear computes x @ W.T + b; pre-transpose to (in, out) layout and
    # zero-pad.  Zero-padded hidden units give ReLU(0 + 0) = 0 and contribute
    # nothing to the decoder, so slicing the output is exact.
    w1_t = jnp.zeros((F, Hp), compute_dtype).at[:, :H].set(
        w1.T.astype(compute_dtype))                 # (F,  Hp)
    w2_t = jnp.zeros((Hp, Fp), compute_dtype).at[:H, :F].set(
        w2.T.astype(compute_dtype))                 # (Hp, Fp)
    b1p = jnp.zeros((1, Hp), jnp.float32).at[:, :H].set(b1.astype(jnp.float32))
    b2p = jnp.zeros((1, Fp), jnp.float32).at[:, :F].set(b2.astype(jnp.float32))
    x_c = x.astype(compute_dtype)

    flops = 2 * B * F * Hp + 2 * B * Hp * Fp
    bytes_accessed = (x_c.size * 2 + w1_t.size * 2 + w2_t.size * 2
                      + b1p.size * 4 + b2p.size * 4 + B * Fp * 4)

    grid = (B // tile_m,)
    out_padded = pl.pallas_call(
        autoencoder_kernel,
        out_shape=jax.ShapeDtypeStruct((B, Fp), jnp.float32),
        grid_spec=pltpu.PrefetchScalarGridSpec(
            num_scalar_prefetch=0,
            grid=grid,
            in_specs=[
                pl.BlockSpec((tile_m, F), lambda i: (i, 0)),   # x tile
                pl.BlockSpec((F, Hp), lambda i: (0, 0)),       # W1^T (resident)
                pl.BlockSpec((1, Hp), lambda i: (0, 0)),       # b1
                pl.BlockSpec((Hp, Fp), lambda i: (0, 0)),      # W2^T (resident)
                pl.BlockSpec((1, Fp), lambda i: (0, 0)),       # b2
            ],
            out_specs=pl.BlockSpec((tile_m, Fp), lambda i: (i, 0)),
        ),
        compiler_params=pltpu.CompilerParams(
            dimension_semantics=("parallel",)),
        cost_estimate=pl.CostEstimate(flops=flops, transcendentals=0,
                                      bytes_accessed=bytes_accessed),
    )(x_c, w1_t, b1p, w2_t, b2p)
    return out_padded[:, :F]


def make_semi_orthogonal(key, out_dim, in_dim, dtype=jnp.float32):
    """Deterministic (out_dim, in_dim) matrix with orthonormal rows or columns,
    matching the guarantee of torch.nn.utils.parametrizations.orthogonal."""
    a = jax.random.normal(key, (max(out_dim, in_dim), min(out_dim, in_dim)),
                          dtype=jnp.float32)
    q, _ = jnp.linalg.qr(a)          # (max, min) with orthonormal columns
    w = q if out_dim >= in_dim else q.T
    return w.astype(dtype)


if __name__ == "__main__":
    # AutoEncoder(features=32, hidden_size=16), batch of 64 samples.
    FEATURES = 32
    HIDDEN = 16
    BATCH = 64

    root = jax.random.PRNGKey(0)
    k_x, k_w1, k_b1, k_w2, k_b2 = jax.random.split(root, 5)

    x = jax.random.normal(k_x, (BATCH, FEATURES), dtype=jnp.float32)

    # lin1 (orthogonal): weight (hidden, features) with orthonormal rows
    w1 = make_semi_orthogonal(k_w1, HIDDEN, FEATURES)          # (16, 32)
    b1 = 0.1 * jax.random.normal(k_b1, (HIDDEN,), dtype=jnp.float32)
    # decoder1 (orthogonal): weight (features, hidden) with orthonormal columns
    w2 = make_semi_orthogonal(k_w2, FEATURES, HIDDEN)          # (32, 16)
    b2 = 0.1 * jax.random.normal(k_b2, (FEATURES,), dtype=jnp.float32)

    out = autoencoder_forward(x, w1, b1, w2, b2)
    out = jax.block_until_ready(out)
    assert out.shape == (BATCH, FEATURES)

    # Tight check against a pure-JAX reference that mirrors the kernel's
    # mixed precision (bf16 operands, f32 accumulation, bf16 activation recast).
    to_bf = lambda a: a.astype(jnp.bfloat16).astype(jnp.float32)
    h_ref = jnp.maximum(to_bf(x) @ to_bf(w1).T + b1, 0.0)
    y_ref = to_bf(h_ref) @ to_bf(w2).T + b2
    assert jnp.allclose(out, y_ref, atol=1e-4, rtol=1e-4)

    # Loose sanity check against the full-f32 PyTorch-equivalent forward.
    ref_f32 = jnp.maximum(x @ w1.T + b1, 0.0) @ w2.T + b2
    assert jnp.allclose(out, ref_f32, atol=1e-1, rtol=1e-1)

    print("KERNEL_OK")
</pallas_src>

<mosaic_0001>
module attributes {stable_mosaic.version = 11 : i64} {
  func.func @autoencoder_kernel(%arg0: i32, %arg1: memref<64x32xbf16, #tpu.memory_space<vmem>>, %arg2: memref<32x128xbf16, #tpu.memory_space<vmem>>, %arg3: memref<1x128xf32, #tpu.memory_space<vmem>>, %arg4: memref<128x128xbf16, #tpu.memory_space<vmem>>, %arg5: memref<1x128xf32, #tpu.memory_space<vmem>>, %arg6: memref<64x128xf32, #tpu.memory_space<vmem>>) attributes {dimension_semantics = [#tpu.dimension_semantics<parallel>], iteration_bounds = array<i64: 1>, scalar_prefetch = 0 : i64, scratch_operands = 0 : i64, tpu.core_type = #tpu.core_type<tc>, window_params = [{transform_indices = @transform_0, window_bounds = array<i64: 64, 32>}, {pipeline_mode = #tpu.pipeline_mode<synchronous>, transform_indices = @transform_1, window_bounds = array<i64: 32, 128>}, {pipeline_mode = #tpu.pipeline_mode<synchronous>, transform_indices = @transform_2, window_bounds = array<i64: 1, 128>}, {pipeline_mode = #tpu.pipeline_mode<synchronous>, transform_indices = @transform_3, window_bounds = array<i64: 128, 128>}, {pipeline_mode = #tpu.pipeline_mode<synchronous>, transform_indices = @transform_4, window_bounds = array<i64: 1, 128>}, {transform_indices = @transform_5, window_bounds = array<i64: 64, 128>}]} {
    %c0 = arith.constant 0 : index
    %c0_0 = arith.constant 0 : index
    %0 = vector.load %arg1[%c0, %c0_0] : memref<64x32xbf16, #tpu.memory_space<vmem>>, vector<64x32xbf16>
    %c0_1 = arith.constant 0 : index
    %c0_2 = arith.constant 0 : index
    %1 = vector.load %arg2[%c0_1, %c0_2] : memref<32x128xbf16, #tpu.memory_space<vmem>>, vector<32x128xbf16>
    %cst = arith.constant dense<0.000000e+00> : vector<64x128xf32>
    %2 = tpu.matmul %0, %1, %cst {dimension_numbers = #tpu.dot_dimension_numbers<[1], [0], [0], [1], [0, 0, 1, 1], [], []>} : vector<64x32xbf16>, vector<32x128xbf16>, vector<64x128xf32> -> vector<64x128xf32>
    %c0_3 = arith.constant 0 : index
    %c0_4 = arith.constant 0 : index
    %3 = vector.load %arg3[%c0_3, %c0_4] : memref<1x128xf32, #tpu.memory_space<vmem>>, vector<1x128xf32>
    %4 = vector.broadcast %3 : vector<1x128xf32> to vector<64x128xf32>
    %5 = arith.addf %2, %4 : vector<64x128xf32>
    %cst_5 = arith.constant 0.000000e+00 : f32
    %6 = vector.broadcast %cst_5 : f32 to vector<64x128xf32>
    %7 = arith.maximumf %5, %6 : vector<64x128xf32>
    %8 = arith.truncf %7 : vector<64x128xf32> to vector<64x128xbf16>
    %c0_6 = arith.constant 0 : index
    %c0_7 = arith.constant 0 : index
    %9 = vector.load %arg4[%c0_6, %c0_7] : memref<128x128xbf16, #tpu.memory_space<vmem>>, vector<128x128xbf16>
    %cst_8 = arith.constant dense<0.000000e+00> : vector<64x128xf32>
    %10 = tpu.matmul %8, %9, %cst_8 {dimension_numbers = #tpu.dot_dimension_numbers<[1], [0], [0], [1], [0, 0, 1, 1], [], []>} : vector<64x128xbf16>, vector<128x128xbf16>, vector<64x128xf32> -> vector<64x128xf32>
    %c0_9 = arith.constant 0 : index
    %c0_10 = arith.constant 0 : index
    %11 = vector.load %arg5[%c0_9, %c0_10] : memref<1x128xf32, #tpu.memory_space<vmem>>, vector<1x128xf32>
    %12 = vector.broadcast %11 : vector<1x128xf32> to vector<64x128xf32>
    %13 = arith.addf %10, %12 : vector<64x128xf32>
    %c0_11 = arith.constant 0 : index
    %c0_12 = arith.constant 0 : index
    %14 = vector.load %arg6[%c0_11, %c0_12] : memref<64x128xf32, #tpu.memory_space<vmem>>, vector<64x128xf32>
    tpu.vector_store %arg6[%c0_11, %c0_12], %13 {strides = array<i32>} : memref<64x128xf32, #tpu.memory_space<vmem>>, vector<64x128xf32>,
    return
  }
  func.func @transform_0(%arg0: i32) -> (i32, i32) {
    %c0_i32 = arith.constant 0 : i32
    %c0_i32_0 = arith.constant 0 : i32
    return %arg0, %c0_i32 : i32, i32
  }
  func.func @transform_1(%arg0: i32) -> (i32, i32) {
    %c0_i32 = arith.constant 0 : i32
    %c0_i32_0 = arith.constant 0 : i32
    %c0_i32_1 = arith.constant 0 : i32
    return %c0_i32, %c0_i32_0 : i32, i32
  }
  func.func @transform_2(%arg0: i32) -> (i32, i32) {
    %c0_i32 = arith.constant 0 : i32
    %c0_i32_0 = arith.constant 0 : i32
    %c0_i32_1 = arith.constant 0 : i32
    return %c0_i32, %c0_i32_0 : i32, i32
  }
  func.func @transform_3(%arg0: i32) -> (i32, i32) {
    %c0_i32 = arith.constant 0 : i32
    %c0_i32_0 = arith.constant 0 : i32
    %c0_i32_1 = arith.constant 0 : i32
    return %c0_i32, %c0_i32_0 : i32, i32
  }
  func.func @transform_4(%arg0: i32) -> (i32, i32) {
    %c0_i32 = arith.constant 0 : i32
    %c0_i32_0 = arith.constant 0 : i32
    %c0_i32_1 = arith.constant 0 : i32
    return %c0_i32, %c0_i32_0 : i32, i32
  }
  func.func @transform_5(%arg0: i32) -> (i32, i32) {
    %c0_i32 = arith.constant 0 : i32
    %c0_i32_0 = arith.constant 0 : i32
    return %arg0, %c0_i32 : i32, i32
  }
}

</mosaic_0001>

<llo_original>
// kernel: tpu_custom_call.1
$region0: #{tpu_custom_call.1}
  #allocation0 [shape = 'u32[]', space=smem, size = 0x4, offset = 0x4, fixed_abs, tag = 'smem constant byte address 0x4 - core index']
  #allocation1 [shape = 'u32[144,128]{1,0:T(1,128)}', space=vmem, size = 0x12000, scoped, tag = 'internal scratch']
  %s0 = inlined_call_operand.vmem [shape: bf16[64,32], index: 0, kind: input, shape index: {}]
  %s1 = inlined_call_operand.vmem [shape: bf16[32,128], index: 1, kind: input, shape index: {}]
  %s2 = inlined_call_operand.vmem [shape: f32[1,128], index: 2, kind: input, shape index: {}]
  %s3 = inlined_call_operand.hbm [shape: bf16[128,128], index: 3, kind: input, shape index: {}]
  %s4 = inlined_call_operand.vmem [shape: f32[1,128], index: 4, kind: input, shape index: {}]
  %s5 = inlined_call_operand.hbm [shape: f32[64,128], index: 5, kind: output, shape index: {}]
  %s6 = sld [smem:[#allocation0]]
  $region34: #{tpu_custom_call.1} parent=0
    _
  %s8 = ssub.s32 1, %s6
  %s9 = scalar_select 0, %s8, %s6
  $region1: #{tpu_custom_call.1} parent=0
    #allocation2 [shape = 'u8[32768]{0}', space=vmem, size = 0x8000, scoped, tag = 'input window, operand 3, single buffered']
    #allocation3 [shape = 's32[1]{0}', space=sflag, size = 0x4, scoped, tag = 'scoped memory for tpu_custom_call.1']
    #allocation4 [shape = 's32[1]{0}', space=sflag, size = 0x4, scoped, tag = 'scoped memory for tpu_custom_call.1']
    #allocation5 [shape = 'u8[32768]{0}', space=vmem, size = 0x8000, scoped, tag = 'output window, operand 0, single buffered']
    %10 = vsyncpa [#allocation3], 0
    %11 = vsyncpa [#allocation4], 0
    // Predicated region
    $region2: #{tpu_custom_call.1} parent=1 // pred_check
      _
    $region3: #{tpu_custom_call.1} parent=1 // pred_check_branch
      %13 = sbr.rel (0) target = $region5
    $region4: #{tpu_custom_call.1} parent=1 // pred_region
      _
    $region5: #{tpu_custom_call.1} parent=1 // pred_fallthru
      _
    // Predicated region
    $region6: #{tpu_custom_call.1} parent=1 // pred_check
      _
    $region7: #{tpu_custom_call.1} parent=1 // pred_check_branch
      %15 = sbr.rel (0) target = $region9
    $region8: #{tpu_custom_call.1} parent=1 // pred_region
      _
    $region9: #{tpu_custom_call.1} parent=1 // pred_fallthru
      _
    // Predicated region
    $region10: #{tpu_custom_call.1} parent=1 // pred_check
      _
    $region11: #{tpu_custom_call.1} parent=1 // pred_check_branch
      %17 = sbr.rel (0) target = $region13
    $region12: #{tpu_custom_call.1} parent=1 // pred_region
      _
    $region13: #{tpu_custom_call.1} parent=1 // pred_fallthru
      _
    // Predicated region
    $region14: #{tpu_custom_call.1} parent=1 // pred_check
      _
    $region15: #{tpu_custom_call.1} parent=1 // pred_check_branch
      %19 = sbr.rel (0) target = $region17
    $region16: #{tpu_custom_call.1} parent=1 // pred_region
      %s21 = ssub.s32 1024, 1024
      %22 = vsyncadd [#allocation3], %s21
      %s23 = sshll.u32 [#allocation2], 4
      %s24 = int_to_ptr.vmem [resolvable:$true] %s23
      %29 = dma.hbm_to_vmem [thread:$0]  %s3, 1024, %s24, [#allocation3], 64, 64, 4
    $region17: #{tpu_custom_call.1} parent=1 // pred_fallthru
      _
    // Predicated region
    $region18: #{tpu_custom_call.1} parent=1 // pred_check
      _
    $region19: #{tpu_custom_call.1} parent=1 // pred_check_branch
      %31 = sbr.rel (0) target = $region21
    $region20: #{tpu_custom_call.1} parent=1 // pred_region
      _
    $region21: #{tpu_custom_call.1} parent=1 // pred_fallthru
      _
    // Predicated region
    $region22: #{tpu_custom_call.1} parent=1 // pred_check
      _
    $region23: #{tpu_custom_call.1} parent=1 // pred_check_branch
      %33 = sbr.rel (0) target = $region25
    $region24: #{tpu_custom_call.1} parent=1 // pred_region
      %34 = dma.done [#allocation3], 1024
    $region25: #{tpu_custom_call.1} parent=1 // pred_fallthru
      _
    %v36 = vld [vmem:[%s0] sm:$0xf]
    %v37 = vld [vmem:[%s0 + $0x4] sm:$0xf]
    %v38 = vld [vmem:[%s0 + $0x8] sm:$0xf]
    %v39 = vld [vmem:[%s0 + $0xc] sm:$0xf]
    %v40 = vld [vmem:[%s0 + $0x10] sm:$0xf]
    %v41 = vld [vmem:[%s0 + $0x14] sm:$0xf]
    %v42 = vld [vmem:[%s0 + $0x18] sm:$0xf]
    %v43 = vld [vmem:[%s0 + $0x1c] sm:$0xf]
    %v44 = vld [vmem:[%s1] sm:$0xf]
    %v45 = vld [vmem:[%s1 + $0x4] sm:$0xf]
    %v46 = vld [vmem:[%s1 + $0x8] sm:$0xf]
    %v47 = vld [vmem:[%s1 + $0xc] sm:$0xf]
    %v48 = vld [vmem:[%s2] sm:$0x1]
    %v50 = vlaneseq
    %v51 = vshrl.u32 %v50, 7
    %v52 = vsub.s32 0, %v51
    %v53 = vrot.slane %v48, %v52
    %v63 = vunpack.c.l.b16 %v36
    %v64 = vunpack.c.l.b16 %v37
    %v65 = vunpack.c.l.b16 %v38
    %v66 = vunpack.c.l.b16 %v39
    %v67 = vunpack.c.l.b16 %v40
    %v68 = vunpack.c.l.b16 %v41
    %v69 = vunpack.c.l.b16 %v42
    %v70 = vunpack.c.l.b16 %v43
    %v71 = vpack.c.b16 %v64, %v63
    %v72 = vpack.c.b16 %v66, %v65
    %v73 = vpack.c.b16 %v68, %v67
    %v74 = vpack.c.b16 %v70, %v69
    %v79 = vunpack.c.l.b16 %v44
    %v80 = vunpack.c.l.b16 %v45
    %v81 = vunpack.c.l.b16 %v46
    %v82 = vunpack.c.l.b16 %v47
    %v83 = vpack.c.b16 %v80, %v79
    %v84 = vpack.c.b16 %v82, %v81
    %vm87 = vcmask 261120
    %v89 = vsel %vm87, %v71, 0
    %v92 = vsel %vm87, %v72, 0
    %v95 = vsel %vm87, %v73, 0
    %v98 = vsel %vm87, %v74, 0
    %100 = vmatprep.subr.bf16.mxu0 0
    %101 = vmatpush1.bf16.msra.mxu0 %v83
    %102 = vmatprep.subr.bf16.mxu0 0
    %103 = vmatpush1.bf16.msra.mxu0 %v84
    %104 = vmatprep.subr.bf16.mxu0 0
    %105 = vmatpush1.bf16.msra.mxu0 0
    %106 = vmatprep.subr.bf16.mxu0 0
    %107 = vmatpush1.bf16.msra.mxu0 0
    %108 = vmatprep.subr.bf16.mxu0 0
    %109 = vmatpush1.bf16.msra.mxu0 0
    %110 = vmatprep.subr.bf16.mxu0 0
    %111 = vmatpush1.bf16.msra.mxu0 0
    %112 = vmatprep.subr.bf16.mxu0 0
    %113 = vmatpush1.bf16.msra.mxu0 0
    %114 = vmatprep.subr.bf16.mxu0 0
    %115 = vmatpush1.bf16.msra.mxu0 0
    %116 = vmatprep.subr.bf16.mxu0 0
    %117 = vmatpush1.bf16.msra.mxu0 0
    %118 = vmatprep.subr.bf16.mxu0 0
    %119 = vmatpush1.bf16.msra.mxu0 0
    %120 = vmatprep.subr.bf16.mxu0 0
    %121 = vmatpush1.bf16.msra.mxu0 0
    %122 = vmatprep.subr.bf16.mxu0 0
    %123 = vmatpush1.bf16.msra.mxu0 0
    %124 = vmatprep.subr.bf16.mxu0 0
    %125 = vmatpush1.bf16.msra.mxu0 0
    %126 = vmatprep.subr.bf16.mxu0 0
    %127 = vmatpush1.bf16.msra.mxu0 0
    %128 = vmatprep.subr.bf16.mxu0 0
    %129 = vmatpush1.bf16.msra.mxu0 0
    %130 = vmatprep.subr.bf16.mxu0 0
    %131 = vmatpush1.bf16.msra.mxu0 0
    %132 = vmatprep.mubr.bf16.mxu0 0
    %133 = vmatmul.mubr.bf16.gmra.mrb[0].mxu0 %v89
    %v134 = vpop.f32.mrb[0].mxu0
    %v135 = vadd.f32 %v53, %v134
    %v136 = vpop.f32.mrb[0].mxu0
    %v137 = vpop.f32.mrb[0].mxu0
    %v138 = vadd.f32 %v53, %v137
    %v139 = vpop.f32.mrb[0].mxu0
    %140 = vmatprep.mubr.bf16.mxu0 0
    %141 = vmatmul.mubr.bf16.gmra.mrb[0].mxu0 %v92
    %v142 = vpop.f32.mrb[0].mxu0
    %v143 = vadd.f32 %v53, %v142
    %v144 = vpop.f32.mrb[0].mxu0
    %v145 = vpop.f32.mrb[0].mxu0
    %v146 = vadd.f32 %v53, %v145
    %v147 = vpop.f32.mrb[0].mxu0
    %148 = vmatprep.mubr.bf16.mxu0 0
    %149 = vmatmul.mubr.bf16.gmra.mrb[0].mxu0 %v95
    %v150 = vpop.f32.mrb[0].mxu0
    %v151 = vadd.f32 %v53, %v150
    %v152 = vpop.f32.mrb[0].mxu0
    %v153 = vpop.f32.mrb[0].mxu0
    %v154 = vadd.f32 %v53, %v153
    %v155 = vpop.f32.mrb[0].mxu0
    %156 = vmatprep.mubr.bf16.mxu0 0
    %157 = vmatmul.mubr.bf16.gmra.mrb[0].mxu0 %v98
    %v158 = vpop.f32.mrb[0].mxu0
    %v159 = vadd.f32 %v53, %v158
    %v160 = vpop.f32.mrb[0].mxu0
    %v161 = vpop.f32.mrb[0].mxu0
    %v162 = vadd.f32 %v53, %v161
    %v163 = vpop.f32.mrb[0].mxu0
    %164 = vdwg.mxu0
    %v165 = vmax.f32 %v135, 0.0
    %v166 = vmax.f32 %v138, 0.0
    %v167 = vmax.f32 %v143, 0.0
    %v168 = vmax.f32 %v146, 0.0
    %v169 = vmax.f32 %v151, 0.0
    %v170 = vmax.f32 %v154, 0.0
    %v171 = vmax.f32 %v159, 0.0
    %v172 = vmax.f32 %v162, 0.0
    %v173 = vpack.c.bf16 %v166, %v165
    %v174 = vpack.c.bf16 %v168, %v167
    %v175 = vpack.c.bf16 %v170, %v169
    %v176 = vpack.c.bf16 %v172, %v171
    %v177 = vld [vmem:[#allocation2] sm:$0xf]
    %v178 = vld [vmem:[#allocation2 + $0x4] sm:$0xf]
    %v179 = vld [vmem:[#allocation2 + $0x8] sm:$0xf]
    %v180 = vld [vmem:[#allocation2 + $0xc] sm:$0xf]
    %v181 = vld [vmem:[#allocation2 + $0x10] sm:$0xf]
    %v182 = vld [vmem:[#allocation2 + $0x14] sm:$0xf]
    %v183 = vld [vmem:[#allocation2 + $0x18] sm:$0xf]
    %v184 = vld [vmem:[#allocation2 + $0x1c] sm:$0xf]
    %v185 = vld [vmem:[#allocation2 + $0x20] sm:$0xf]
    %v186 = vld [vmem:[#allocation2 + $0x24] sm:$0xf]
    %v187 = vld [vmem:[#allocation2 + $0x28] sm:$0xf]
    %v188 = vld [vmem:[#allocation2 + $0x2c] sm:$0xf]
    %v189 = vld [vmem:[#allocation2 + $0x30] sm:$0xf]
    %v190 = vld [vmem:[#allocation2 + $0x34] sm:$0xf]
    %v191 = vld [vmem:[#allocation2 + $0x38] sm:$0xf]
    %v192 = vld [vmem:[#allocation2 + $0x3c] sm:$0xf]
    %v193 = vld [vmem:[%s4] sm:$0x1]
    %v195 = vlaneseq
    %v196 = vshrl.u32 %v195, 7
    %v197 = vsub.s32 0, %v196
    %v198 = vrot.slane %v193, %v197
    %v216 = vunpack.c.l.b16 %v177
    %v217 = vunpack.c.l.b16 %v178
    %v218 = vunpack.c.l.b16 %v179
    %v219 = vunpack.c.l.b16 %v180
    %v220 = vunpack.c.l.b16 %v181
    %v221 = vunpack.c.l.b16 %v182
    %v222 = vunpack.c.l.b16 %v183
    %v223 = vunpack.c.l.b16 %v184
    %v224 = vunpack.c.l.b16 %v185
    %v225 = vunpack.c.l.b16 %v186
    %v226 = vunpack.c.l.b16 %v187
    %v227 = vunpack.c.l.b16 %v188
    %v228 = vunpack.c.l.b16 %v189
    %v229 = vunpack.c.l.b16 %v190
    %v230 = vunpack.c.l.b16 %v191
    %v231 = vunpack.c.l.b16 %v192
    %v232 = vpack.c.b16 %v217, %v216
    %v233 = vpack.c.b16 %v219, %v218
    %v234 = vpack.c.b16 %v221, %v220
    %v235 = vpack.c.b16 %v223, %v222
    %v236 = vpack.c.b16 %v225, %v224
    %v237 = vpack.c.b16 %v227, %v226
    %v238 = vpack.c.b16 %v229, %v228
    %v239 = vpack.c.b16 %v231, %v230
    %248 = vmatprep.subr.bf16.mxu0 0
    %249 = vmatpush1.bf16.msra.mxu0 %v232
    %250 = vmatprep.subr.bf16.mxu0 0
    %251 = vmatpush1.bf16.msra.mxu0 %v233
    %252 = vmatprep.subr.bf16.mxu0 0
    %253 = vmatpush1.bf16.msra.mxu0 %v234
    %254 = vmatprep.subr.bf16.mxu0 0
    %255 = vmatpush1.bf16.msra.mxu0 %v235
    %256 = vmatprep.subr.bf16.mxu0 0
    %257 = vmatpush1.bf16.msra.mxu0 %v236
    %258 = vmatprep.subr.bf16.mxu0 0
    %259 = vmatpush1.bf16.msra.mxu0 %v237
    %260 = vmatprep.subr.bf16.mxu0 0
    %261 = vmatpush1.bf16.msra.mxu0 %v238
    %262 = vmatprep.subr.bf16.mxu0 0
    %263 = vmatpush1.bf16.msra.mxu0 %v239
    %264 = vmatprep.subr.bf16.mxu0 0
    %265 = vmatpush1.bf16.msra.mxu0 0
    %266 = vmatprep.subr.bf16.mxu0 0
    %267 = vmatpush1.bf16.msra.mxu0 0
    %268 = vmatprep.subr.bf16.mxu0 0
    %269 = vmatpush1.bf16.msra.mxu0 0
    %270 = vmatprep.subr.bf16.mxu0 0
    %271 = vmatpush1.bf16.msra.mxu0 0
    %272 = vmatprep.subr.bf16.mxu0 0
    %273 = vmatpush1.bf16.msra.mxu0 0
    %274 = vmatprep.subr.bf16.mxu0 0
    %275 = vmatpush1.bf16.msra.mxu0 0
    %276 = vmatprep.subr.bf16.mxu0 0
    %277 = vmatpush1.bf16.msra.mxu0 0
    %278 = vmatprep.subr.bf16.mxu0 0
    %279 = vmatpush1.bf16.msra.mxu0 0
    %280 = vmatprep.mubr.bf16.mxu0 0
    %281 = vmatmul.mubr.bf16.gmra.mrb[0].mxu0 %v173
    %v282 = vpop.f32.mrb[0].mxu0
    %v283 = vadd.f32 %v198, %v282
    %v284 = vpop.f32.mrb[0].mxu0
    %v285 = vpop.f32.mrb[0].mxu0
    %v286 = vadd.f32 %v198, %v285
    %v287 = vpop.f32.mrb[0].mxu0
    %288 = vmatprep.mubr.bf16.mxu0 0
    %289 = vmatmul.mubr.bf16.gmra.mrb[0].mxu0 %v174
    %v290 = vpop.f32.mrb[0].mxu0
    %v291 = vadd.f32 %v198, %v290
    %v292 = vpop.f32.mrb[0].mxu0
    %v293 = vpop.f32.mrb[0].mxu0
    %v294 = vadd.f32 %v198, %v293
    %v295 = vpop.f32.mrb[0].mxu0
    %296 = vmatprep.mubr.bf16.mxu0 0
    %297 = vmatmul.mubr.bf16.gmra.mrb[0].mxu0 %v175
    %v298 = vpop.f32.mrb[0].mxu0
    %v299 = vadd.f32 %v198, %v298
    %v300 = vpop.f32.mrb[0].mxu0
    %v301 = vpop.f32.mrb[0].mxu0
    %v302 = vadd.f32 %v198, %v301
    %v303 = vpop.f32.mrb[0].mxu0
    %304 = vmatprep.mubr.bf16.mxu0 0
    %305 = vmatmul.mubr.bf16.gmra.mrb[0].mxu0 %v176
    %v306 = vpop.f32.mrb[0].mxu0
    %v307 = vadd.f32 %v198, %v306
    %v308 = vpop.f32.mrb[0].mxu0
    %v309 = vpop.f32.mrb[0].mxu0
    %v310 = vadd.f32 %v198, %v309
    %v311 = vpop.f32.mrb[0].mxu0
    %312 = vdwg.mxu0
    %313 = vst [vmem:[#allocation5] sm:$0xff] %v283
    %314 = vst [vmem:[#allocation5 + $0x8] sm:$0xff] %v286
    %315 = vst [vmem:[#allocation5 + $0x10] sm:$0xff] %v291
    %316 = vst [vmem:[#allocation5 + $0x18] sm:$0xff] %v294
    %317 = vst [vmem:[#allocation5 + $0x20] sm:$0xff] %v299
    %318 = vst [vmem:[#allocation5 + $0x28] sm:$0xff] %v302
    %319 = vst [vmem:[#allocation5 + $0x30] sm:$0xff] %v307
    %320 = vst [vmem:[#allocation5 + $0x38] sm:$0xff] %v310
    // Predicated region
    $region26: #{tpu_custom_call.1} parent=1 // pred_check
      _
    $region27: #{tpu_custom_call.1} parent=1 // pred_check_branch
      %322 = sbr.rel (0) target = $region29
    $region28: #{tpu_custom_call.1} parent=1 // pred_region
      %s324 = ssub.s32 1024, 1024
      %325 = vsyncadd [#allocation4], %s324
      %s326 = sshll.u32 [#allocation5], 4
      %s327 = int_to_ptr.vmem [resolvable:$true] %s326
      %332 = dma.vmem_to_hbm [thread:$0]  %s327, 1024, %s5, [#allocation4], 128, 128, 8
    $region29: #{tpu_custom_call.1} parent=1 // pred_fallthru
      _
    // Predicated region
    $region30: #{tpu_custom_call.1} parent=1 // pred_check
      _
    $region31: #{tpu_custom_call.1} parent=1 // pred_check_branch
      %334 = sbr.rel (0) target = $region33
    $region32: #{tpu_custom_call.1} parent=1 // pred_region
      %335 = dma.done [#allocation4], 1024
    $region33: #{tpu_custom_call.1} parent=1 // pred_fallthru
      _
    %336 = vsyncpa [#allocation3], 1
    %337 = vsyncpa [#allocation4], 1

</llo_original>
